<compile_context>
chip_gen: v7x
topology: tpu7x:2x2x1
jax: 0.10.0
libtpu: 0.0.40
codegen_flags: <defaults>
</compile_context>

<pallas_src>
import functools

import jax
import jax.numpy as jnp
from jax.experimental import pallas as pl
from jax.experimental.pallas import tpu as pltpu


def _identity_dma_kernel(rows_per_chunk, x_hbm, o_hbm, sem):
    """Copy one row-chunk of x -> out with a single HBM->HBM DMA."""
    i = pl.program_id(0)
    r0 = pl.multiple_of(i * rows_per_chunk, rows_per_chunk)
    cp = pltpu.make_async_copy(
        x_hbm.at[pl.ds(r0, rows_per_chunk), :],
        o_hbm.at[pl.ds(r0, rows_per_chunk), :],
        sem,
    )
    cp.start()
    cp.wait()


# Widest-first lane-dense column widths (fewer, larger contiguous DMA slabs).
_LANE_WIDTHS = (32768, 16384, 8192, 4096, 2048, 1024, 512, 256, 128)

# Cap per-DMA slab size; purely a DMA-descriptor granularity choice — no VMEM
# is consumed by this kernel on any generation.
_MAX_CHUNK_BYTES = 64 * 1024 * 1024


def _lane_dense_shape(n):
    for c in _LANE_WIDTHS:
        if n % c == 0:
            return n // c, c
    # Lane-unfriendly element count: single-row view, one whole-array DMA.
    return 1, n


@jax.jit
def _identity_pallas(x):
    """Materialized copy of x via pure HBM->HBM DMA (test path only)."""
    n = x.size
    itemsize = jnp.dtype(x.dtype).itemsize

    rows, cols = _lane_dense_shape(n)
    x2 = x.reshape(rows, cols)

    # Chunk rows across the grid: at least 2 chunks when rows is even (so the
    # "parallel" axis can shard across v7x's 2 TensorCores), splitting further
    # (always by exact divisors -> no masked tail) while chunks exceed the cap.
    num_chunks = 2 if (rows % 2 == 0 and rows >= 2) else 1
    while (rows % (num_chunks * 2) == 0
           and (rows // num_chunks) * cols * itemsize > _MAX_CHUNK_BYTES):
        num_chunks *= 2
    rows_per_chunk = rows // num_chunks

    out2 = pl.pallas_call(
        functools.partial(_identity_dma_kernel, rows_per_chunk),
        out_shape=jax.ShapeDtypeStruct((rows, cols), x.dtype),
        grid=(num_chunks,),
        in_specs=[pl.BlockSpec(memory_space=pl.ANY)],   # stay in HBM
        out_specs=pl.BlockSpec(memory_space=pl.ANY),    # stay in HBM
        scratch_shapes=[pltpu.SemaphoreType.DMA],
        cost_estimate=pl.CostEstimate(
            flops=0,
            transcendentals=0,
            bytes_accessed=2 * n * itemsize,
        ),
        compiler_params=pltpu.CompilerParams(
            dimension_semantics=("parallel",),
        ),
    )(x2)

    return out2.reshape(x.shape)


def identity(x, *, force_pallas=False):
    """Identity forward pass (matches torch.nn Identity semantics).

    Identity moves zero bytes, so the default path ALWAYS returns `x`
    unchanged — no kernel launch, no HBM traffic, exact for every shape,
    dtype and size.  `force_pallas=True` runs the HBM->HBM DMA copy kernel
    instead (returns a new buffer with identical contents); it exists purely
    to exercise/test the Pallas path.
    """
    if not force_pallas:
        return x
    if x.ndim == 0 or x.size == 0:
        return x
    return _identity_pallas(x)


if __name__ == "__main__":
    key = jax.random.PRNGKey(0)
    # Small NCHW input consistent with a vision-module forward.
    x = jax.random.normal(key, (2, 4, 16, 16), dtype=jnp.float32)

    # Default path: unconditional no-op — must be exact (it IS x).
    y_fast = identity(x)
    y_fast = jax.block_until_ready(y_fast)
    assert y_fast.shape == x.shape and y_fast.dtype == x.dtype
    assert bool(jnp.all(y_fast == x))

    # Forced Pallas path: exercises the HBM->HBM DMA copy kernel once.
    y_kernel = identity(x, force_pallas=True)
    y_kernel = jax.block_until_ready(y_kernel)
    assert y_kernel.shape == x.shape and y_kernel.dtype == x.dtype
    assert bool(jnp.all(y_kernel == x))

    print("KERNEL_OK")
</pallas_src>

<mosaic_0001>
module attributes {stable_mosaic.version = 11 : i64} {
  func.func @_identity_dma_kernel(%arg0: i32, %arg1: memref<1x2048xf32, #tpu.memory_space<any>>, %arg2: memref<1x2048xf32, #tpu.memory_space<any>>, %arg3: memref<!tpu.dma_semaphore, #tpu.memory_space<semaphore_mem>>) attributes {dimension_semantics = [#tpu.dimension_semantics<parallel>], iteration_bounds = array<i64: 1>, scalar_prefetch = 0 : i64, scratch_operands = 1 : i64, tpu.core_type = #tpu.core_type<tc>, window_params = [{}, {}]} {
    %c1_i32 = arith.constant 1 : i32
    %0 = arith.muli %arg0, %c1_i32 : i32
    %1 = tpu.assume_multiple %0, 1 : i32
    %c0_i32 = arith.constant 0 : i32
    %2 = tpu.memref_slice %arg1[%1, %c0_i32] : memref<1x2048xf32, #tpu.memory_space<any>> -> memref<1x2048xf32, #tpu.memory_space<any>>
    %c0_i32_0 = arith.constant 0 : i32
    %3 = tpu.memref_slice %arg2[%1, %c0_i32_0] : memref<1x2048xf32, #tpu.memory_space<any>> -> memref<1x2048xf32, #tpu.memory_space<any>>
    tpu.enqueue_dma source(%2 : memref<1x2048xf32, #tpu.memory_space<any>>) target(%3 : memref<1x2048xf32, #tpu.memory_space<any>>) target_semaphore(%arg3 : memref<!tpu.dma_semaphore, #tpu.memory_space<semaphore_mem>>)
    %c0_i32_1 = arith.constant 0 : i32
    %4 = tpu.memref_slice %arg1[%1, %c0_i32_1] : memref<1x2048xf32, #tpu.memory_space<any>> -> memref<1x2048xf32, #tpu.memory_space<any>>
    %c0_i32_2 = arith.constant 0 : i32
    %5 = tpu.memref_slice %arg2[%1, %c0_i32_2] : memref<1x2048xf32, #tpu.memory_space<any>> -> memref<1x2048xf32, #tpu.memory_space<any>>
    tpu.wait_dma2 semaphore(%arg3 : memref<!tpu.dma_semaphore, #tpu.memory_space<semaphore_mem>>) src(%4 : memref<1x2048xf32, #tpu.memory_space<any>>) dst(%5 : memref<1x2048xf32, #tpu.memory_space<any>>)
    return
  }
}

</mosaic_0001>

<llo_original>
// kernel: _identity_pallas.1
$region0: #{_identity_pallas.1}
  #allocation0 [shape = 'u32[]', space=smem, size = 0x4, offset = 0x4, fixed_abs, tag = 'smem constant byte address 0x4 - core index']
  #allocation1 [shape = 'u32[144,128]{1,0:T(1,128)}', space=vmem, size = 0x12000, scoped, tag = 'internal scratch']
  #allocation2 [shape = 's32[1]{0}', space=sflag, size = 0x4, scoped, tag = 'scratch operand']
  #allocation3 [shape = 's32[]', space=sflag, size = 0x4, offset = 0, fixed_abs, tag = 'sflag constant byte address 0x0 - dummy sync flag']
  %s0 = inlined_call_operand.vmem [shape: f32[1,2048], index: 0, kind: input, shape index: {}]
  %s1 = inlined_call_operand.vmem [shape: f32[1,2048], index: 1, kind: output, shape index: {}]
  %s2 = sld [smem:[#allocation0]]
  $region36: #{_identity_pallas.1} parent=0
    _
  %s4 = ssub.s32 1, %s2
  %s5 = scalar_select 0, %s4, %s2
  %s6 = smul.u32 0, 16
  %s7 = scalar_lea.vmem %s0, %s6
  %s8 = scalar_lea.vmem %s1, %s6
  %p10 = scmp.lt.u32.totalorder 16, 8
  %p11 = pneg %p10
  // Predicated region
  $region2: #{_identity_pallas.1} parent=0 // pred_check
    _
  $region3: #{_identity_pallas.1} parent=0 // pred_check_branch
    %13 = sbr.rel (%p10) target = $region5
  $region4: #{_identity_pallas.1} parent=0 // pred_region
    %s28 = sand.u32 16, 7
    %p29 = scmp.eq.s32.totalorder %s28, 0
    // Predicated region
    $region17: #{_identity_pallas.1} parent=4 // pred_check
      %p30 = pneg %p29
    $region18: #{_identity_pallas.1} parent=4 // pred_check_branch
      %32 = sbr.rel (%p30) target = $region20
    $region19: #{_identity_pallas.1} parent=4 // pred_region
      loop: start=0, step=1, limit=1
      $region21: #{_identity_pallas.1} parent=19 // loop_pre_header
        _
      $region22: #{_identity_pallas.1} parent=19 // loop_header
        %s34 = sphi 0, %s38
        %p35 = scmp.ge.s32.totalorder %s34, 1
        %s39 = sphi %s7, %s7
        %s40 = sphi %s8, %s8
      $region23: #{_identity_pallas.1} parent=19 // loop_header_branch
        %37 = sbr.rel (%p35) target = $region27
      $region24: #{_identity_pallas.1} parent=19 // loop_body
        %v41 = vld [vmem:[%s39] sm:$0xff]
        %42 = vst [vmem:[%s40] sm:$0xff] %v41
        %v43 = vld [vmem:[%s39 + $0x8] sm:$0xff]
        %44 = vst [vmem:[%s40 + $0x8] sm:$0xff] %v43
      $region25: #{_identity_pallas.1} parent=19 // loop_footer
        %s38 = sadd.s32 1, %s34
      $region26: #{_identity_pallas.1} parent=19 // loop_footer_branch
        %33 = sbr.rel target = $region22
      $region27: #{_identity_pallas.1} parent=19 // loop_exit
        _
    $region20: #{_identity_pallas.1} parent=4 // pred_fallthru
      _
    %p45 = pneg %p29
    // Predicated region
    $region28: #{_identity_pallas.1} parent=4 // pred_check
      _
    $region29: #{_identity_pallas.1} parent=4 // pred_check_branch
      %47 = sbr.rel (%p29) target = $region31
    $region30: #{_identity_pallas.1} parent=4 // pred_region
      %s48 = sand.u32 16, 7
    $region31: #{_identity_pallas.1} parent=4 // pred_fallthru
      _
  $region5: #{_identity_pallas.1} parent=0 // pred_fallthru
    _
  // Predicated region
  $region6: #{_identity_pallas.1} parent=0 // pred_check
    %p14 = pneg %p10
  $region7: #{_identity_pallas.1} parent=0 // pred_check_branch
    %16 = sbr.rel (%p14) target = $region9
  $region8: #{_identity_pallas.1} parent=0 // pred_region
    %s17 = sshllo.u32 0, 16
    loop: start=0, step=1, limit=1
    $region10: #{_identity_pallas.1} parent=8 // loop_pre_header
      _
    $region11: #{_identity_pallas.1} parent=8 // loop_header
      %s19 = sphi 0, %s23
      %p20 = scmp.ge.s32.totalorder %s19, 1
      %s24 = sphi %s7, %s7
      %s25 = sphi %s8, %s8
    $region12: #{_identity_pallas.1} parent=8 // loop_header_branch
      %22 = sbr.rel (%p20) target = $region16
    $region13: #{_identity_pallas.1} parent=8 // loop_body
      %v26 = vld [vmem:[%s24] sm:%s17]
      %27 = vst [vmem:[%s25] sm:%s17] %v26
    $region14: #{_identity_pallas.1} parent=8 // loop_footer
      %s23 = sadd.s32 1, %s19
    $region15: #{_identity_pallas.1} parent=8 // loop_footer_branch
      %18 = sbr.rel target = $region11
    $region16: #{_identity_pallas.1} parent=8 // loop_exit
      _
  $region9: #{_identity_pallas.1} parent=0 // pred_fallthru
    _
  // Predicated region
  $region32: #{_identity_pallas.1} parent=0 // pred_check
    _
  $region33: #{_identity_pallas.1} parent=0 // pred_check_branch
    %51 = sbr.rel (0) target = $region35
  $region34: #{_identity_pallas.1} parent=0 // pred_region
    %52 = vsyncadd [#allocation2], 256
  $region35: #{_identity_pallas.1} parent=0 // pred_fallthru
    _
  %s53 = smul.u32 1, 16
  %s54 = sshll.u32 %s53, 4
  %55 = dma.done [#allocation2], %s54
  %56 = vsyncmov [#allocation2]
  %s57 = vpop.sfrf %56
  %p58 = scmp.eq.s32.totalorder %s57, 0
  %p59 = pneg %p58
  %61 = shalt.err (%p59)

</llo_original>
